<compile_context>
chip_gen: v7x
topology: tpu7x:2x2x1
jax: 0.10.0
libtpu: 0.0.40
codegen_flags: <defaults>
</compile_context>

<pallas_src>
import math

import jax
import jax.numpy as jnp
from jax.experimental import pallas as pl
from jax.experimental.pallas import tpu as pltpu


# --------------------------------------------------------------------------
# Kernel: one MXU matmul per (batch-tile, class-tile) grid point.
# --------------------------------------------------------------------------
def arc_margin_kernel(x_ref, w_ref, o_ref):
    # x_ref: (TB, D)  bf16  row-normalized features
    # w_ref: (D, TN)  bf16  row-normalized weight, pre-transposed
    # o_ref: (TB, TN) f32   cosine output tile
    o_ref[...] = jnp.dot(
        x_ref[...], w_ref[...], preferred_element_type=jnp.float32
    ).astype(o_ref.dtype)


# --------------------------------------------------------------------------
# Helpers
# --------------------------------------------------------------------------
def _round_up(x, m):
    return ((x + m - 1) // m) * m


def _vmem_capacity_bytes():
    try:
        info = pltpu.get_tpu_info()
        cap = getattr(info, "vmem_capacity_bytes", None)
        if cap:
            return int(cap)
    except Exception:
        pass
    # Conservative fallback = v7x per-core VMEM.
    return 64 * 1024 * 1024


def _choose_tiles(B, D, N, tile_budget_bytes):
    """Pick (TB, TN): TB covers the padded batch if it fits, TN as large as
    the VMEM budget allows (256-aligned for v6e/v7x MXU, 128 minimum)."""
    lane = 256 if N >= 256 else 128
    TB = min(_round_up(B, 8), 1024)

    def working_set(tb, tn):
        # bf16 x tile + bf16 w tile + f32 out tile, all double-buffered.
        return 2 * (tb * D * 2 + D * tn * 2 + tb * tn * 4)

    Np_full = _round_up(N, lane)
    TN = min(Np_full, 4096)

    # Keep >= 2 grid steps along the class axis when N allows it, so the
    # "parallel" j axis can be sharded across the 2 TensorCores on v7x.
    if TN >= Np_full and Np_full >= 2 * lane:
        TN = _round_up(pl.cdiv(Np_full, 2), lane)

    # Shrink TN, then TB, until the double-buffered working set fits VMEM.
    while TN > lane and working_set(TB, TN) > tile_budget_bytes:
        TN -= lane
    while TB > 8 and working_set(TB, TN) > tile_budget_bytes:
        TB = _round_up(max(8, TB // 2), 8)
    return TB, TN


# --------------------------------------------------------------------------
# Wrapper
# --------------------------------------------------------------------------
def arc_margin_product(features, weight):
    """cosine = normalize(features) @ normalize(weight).T  -> (B, N) f32."""
    B, D = features.shape
    N, Dw = weight.shape
    assert D == Dw

    eps = jnp.float32(1e-12)

    # Hoisted feature normalization (one pass over the small (B, D) array),
    # then cast to bf16 for the MXU -> also halves the x DMA bytes.
    x32 = features.astype(jnp.float32)
    x_ss = jnp.sum(x32 * x32, axis=-1, keepdims=True)
    x_n = (x32 * jax.lax.rsqrt(jnp.maximum(x_ss, eps * eps))).astype(jnp.bfloat16)

    # Weight-row normalization folded into the bf16 cast the wrapper already
    # does; pre-transpose to (D, N) so classes map to lanes inside the kernel.
    # NOTE: for a static parameter this normalized bf16 copy can be cached
    # across calls instead of recomputed per step.
    w32 = weight.astype(jnp.float32)
    w_ss = jnp.sum(w32 * w32, axis=-1, keepdims=True)
    w_n = (w32 * jax.lax.rsqrt(jnp.maximum(w_ss, eps * eps))).astype(jnp.bfloat16)
    w_t = w_n.T  # (D, N)

    # Generation-aware VMEM budget (v7x: 64 MiB physical; v5e/v6e: 128 MiB).
    vmem_cap = _vmem_capacity_bytes()
    vmem_limit = min((vmem_cap * 3) // 4, 96 * 1024 * 1024)
    vmem_limit = max(vmem_limit, 32 * 1024 * 1024)
    tile_budget = vmem_limit - (4 << 20)

    TB, TN = _choose_tiles(B, D, N, tile_budget)
    Bp = _round_up(B, TB)
    Np = _round_up(N, TN)

    # Pad *after* normalization so padded rows/columns are exactly zero.
    if Bp != B:
        x_n = jnp.pad(x_n, ((0, Bp - B), (0, 0)))
    if Np != N:
        w_t = jnp.pad(w_t, ((0, 0), (0, Np - N)))

    grid = (Bp // TB, Np // TN)

    cost = pl.CostEstimate(
        flops=2 * B * N * D,
        transcendentals=0,
        bytes_accessed=B * D * 2 + N * D * 2 + B * N * 4,
    )

    out = pl.pallas_call(
        arc_margin_kernel,
        out_shape=jax.ShapeDtypeStruct((Bp, Np), jnp.float32),
        grid=grid,
        in_specs=[
            pl.BlockSpec((TB, D), lambda i, j: (i, 0)),
            pl.BlockSpec((D, TN), lambda i, j: (0, j)),
        ],
        out_specs=pl.BlockSpec((TB, TN), lambda i, j: (i, j)),
        compiler_params=pltpu.CompilerParams(
            dimension_semantics=("parallel", "parallel"),
            vmem_limit_bytes=int(vmem_limit),
        ),
        cost_estimate=cost,
    )(x_n, w_t)

    return out[:B, :N]


# --------------------------------------------------------------------------
# Parameter init + reference
# --------------------------------------------------------------------------
def xavier_uniform(key, out_features, in_features, dtype=jnp.float32):
    # nn.init.xavier_uniform_ on a (out, in) 2D tensor:
    # bound = sqrt(6 / (fan_in + fan_out)), fan_in = in, fan_out = out
    bound = math.sqrt(6.0 / (in_features + out_features))
    return jax.random.uniform(
        key, (out_features, in_features), dtype=dtype, minval=-bound, maxval=bound
    )


def reference(features, weight):
    eps = 1e-12
    xn = features / jnp.maximum(
        jnp.linalg.norm(features, axis=-1, keepdims=True), eps
    )
    wn = weight / jnp.maximum(
        jnp.linalg.norm(weight, axis=-1, keepdims=True), eps
    )
    return xn @ wn.T


if __name__ == "__main__":
    key = jax.random.PRNGKey(0)
    k_feat, k_w = jax.random.split(key)

    batch = 4
    in_features = 32
    out_features = 16

    features = jax.random.normal(k_feat, (batch, in_features), dtype=jnp.float32)
    weight = xavier_uniform(k_w, out_features, in_features)

    cosine = arc_margin_product(features, weight)
    jax.block_until_ready(cosine)

    ref = reference(features, weight)
    assert cosine.shape == (batch, out_features)
    # bf16 MXU operands -> tolerance looser than pure-f32.
    assert jnp.allclose(cosine, ref, atol=2e-2, rtol=2e-2)

    print("KERNEL_OK")
</pallas_src>

<mosaic_0001>
module attributes {stable_mosaic.version = 11 : i64} {
  func.func @arc_margin_kernel(%arg0: i32, %arg1: i32, %arg2: memref<8x32xbf16, #tpu.memory_space<vmem>>, %arg3: memref<32x128xbf16, #tpu.memory_space<vmem>>, %arg4: memref<8x128xf32, #tpu.memory_space<vmem>>) attributes {dimension_semantics = [#tpu.dimension_semantics<parallel>, #tpu.dimension_semantics<parallel>], iteration_bounds = array<i64: 1, 1>, scalar_prefetch = 0 : i64, scratch_operands = 0 : i64, tpu.core_type = #tpu.core_type<tc>, window_params = [{transform_indices = @transform_0, window_bounds = array<i64: 8, 32>}, {transform_indices = @transform_1, window_bounds = array<i64: 32, 128>}, {transform_indices = @transform_2, window_bounds = array<i64: 8, 128>}]} {
    %c0 = arith.constant 0 : index
    %c0_0 = arith.constant 0 : index
    %0 = vector.load %arg2[%c0, %c0_0] : memref<8x32xbf16, #tpu.memory_space<vmem>>, vector<8x32xbf16>
    %c0_1 = arith.constant 0 : index
    %c0_2 = arith.constant 0 : index
    %1 = vector.load %arg3[%c0_1, %c0_2] : memref<32x128xbf16, #tpu.memory_space<vmem>>, vector<32x128xbf16>
    %cst = arith.constant dense<0.000000e+00> : vector<8x128xf32>
    %2 = tpu.matmul %0, %1, %cst {dimension_numbers = #tpu.dot_dimension_numbers<[1], [0], [0], [1], [0, 0, 1, 1], [], []>} : vector<8x32xbf16>, vector<32x128xbf16>, vector<8x128xf32> -> vector<8x128xf32>
    %c0_3 = arith.constant 0 : index
    %c0_4 = arith.constant 0 : index
    %3 = vector.load %arg4[%c0_3, %c0_4] : memref<8x128xf32, #tpu.memory_space<vmem>>, vector<8x128xf32>
    tpu.vector_store %arg4[%c0_3, %c0_4], %2 {strides = array<i32>} : memref<8x128xf32, #tpu.memory_space<vmem>>, vector<8x128xf32>,
    return
  }
  func.func @transform_0(%arg0: i32, %arg1: i32) -> (i32, i32) {
    %c0_i32 = arith.constant 0 : i32
    %c0_i32_0 = arith.constant 0 : i32
    return %arg0, %c0_i32 : i32, i32
  }
  func.func @transform_1(%arg0: i32, %arg1: i32) -> (i32, i32) {
    %c0_i32 = arith.constant 0 : i32
    %c0_i32_0 = arith.constant 0 : i32
    return %c0_i32, %arg1 : i32, i32
  }
  func.func @transform_2(%arg0: i32, %arg1: i32) -> (i32, i32) {
    %c0_i32 = arith.constant 0 : i32
    return %arg0, %arg1 : i32, i32
  }
}

</mosaic_0001>

<llo_original>
// kernel: tpu_custom_call.1
$region0: #{tpu_custom_call.1}
  #allocation0 [shape = 'u32[]', space=smem, size = 0x4, offset = 0x4, fixed_abs, tag = 'smem constant byte address 0x4 - core index']
  #allocation1 [shape = 'u32[144,128]{1,0:T(1,128)}', space=vmem, size = 0x12000, scoped, tag = 'internal scratch']
  %s0 = inlined_call_operand.hbm [shape: bf16[8,32], index: 0, kind: input, shape index: {}]
  %s1 = inlined_call_operand.hbm [shape: bf16[32,128], index: 1, kind: input, shape index: {}]
  %s2 = inlined_call_operand.hbm [shape: f32[8,128], index: 2, kind: output, shape index: {}]
  %s3 = sld [smem:[#allocation0]]
  $region26: #{tpu_custom_call.1} parent=0
    _
  %s5 = ssub.s32 1, %s3
  %s6 = scalar_select 0, %s5, %s3
  $region1: #{tpu_custom_call.1} parent=0
    #allocation2 [shape = 'u8[2048]{0}', space=vmem, size = 0x800, scoped, tag = 'input window, operand 0, single buffered']
    #allocation3 [shape = 's32[1]{0}', space=sflag, size = 0x4, scoped, tag = 'scoped memory for tpu_custom_call.1']
    #allocation4 [shape = 's32[1]{0}', space=sflag, size = 0x4, scoped, tag = 'scoped memory for tpu_custom_call.1']
    #allocation5 [shape = 'u8[8192]{0}', space=vmem, size = 0x2000, scoped, tag = 'input window, operand 1, single buffered']
    #allocation6 [shape = 's32[1]{0}', space=sflag, size = 0x4, scoped, tag = 'scoped memory for tpu_custom_call.1']
    #allocation7 [shape = 'u8[4096]{0}', space=vmem, size = 0x1000, scoped, tag = 'output window, operand 0, single buffered']
    %7 = vsyncpa [#allocation3], 0
    %8 = vsyncpa [#allocation6], 0
    %9 = vsyncpa [#allocation4], 0
    // Predicated region
    $region2: #{tpu_custom_call.1} parent=1 // pred_check
      _
    $region3: #{tpu_custom_call.1} parent=1 // pred_check_branch
      %11 = sbr.rel (0) target = $region5
    $region4: #{tpu_custom_call.1} parent=1 // pred_region
      %s13 = ssub.s32 64, 64
      %14 = vsyncadd [#allocation3], %s13
      %s16 = sshll.u32 [#allocation2], 4
      %s17 = int_to_ptr.vmem [resolvable:$true] %s16
      %19 = dma.hbm_to_vmem [thread:$0]  %s0, 64, %s17, [#allocation3]
    $region5: #{tpu_custom_call.1} parent=1 // pred_fallthru
      _
    // Predicated region
    $region6: #{tpu_custom_call.1} parent=1 // pred_check
      _
    $region7: #{tpu_custom_call.1} parent=1 // pred_check_branch
      %21 = sbr.rel (0) target = $region9
    $region8: #{tpu_custom_call.1} parent=1 // pred_region
      %s23 = ssub.s32 256, 256
      %24 = vsyncadd [#allocation6], %s23
      %s25 = sshll.u32 [#allocation5], 4
      %s26 = int_to_ptr.vmem [resolvable:$true] %s25
      %31 = dma.hbm_to_vmem [thread:$0]  %s1, 256, %s26, [#allocation6], 64, 64, 4
    $region9: #{tpu_custom_call.1} parent=1 // pred_fallthru
      _
    // Predicated region
    $region10: #{tpu_custom_call.1} parent=1 // pred_check
      _
    $region11: #{tpu_custom_call.1} parent=1 // pred_check_branch
      %33 = sbr.rel (0) target = $region13
    $region12: #{tpu_custom_call.1} parent=1 // pred_region
      %34 = dma.done [#allocation3], 64
    $region13: #{tpu_custom_call.1} parent=1 // pred_fallthru
      _
    // Predicated region
    $region14: #{tpu_custom_call.1} parent=1 // pred_check
      _
    $region15: #{tpu_custom_call.1} parent=1 // pred_check_branch
      %36 = sbr.rel (0) target = $region17
    $region16: #{tpu_custom_call.1} parent=1 // pred_region
      %37 = dma.done [#allocation6], 256
    $region17: #{tpu_custom_call.1} parent=1 // pred_fallthru
      _
    %v39 = vld [vmem:[#allocation2] sm:$0xf]
    %v40 = vld [vmem:[#allocation5] sm:$0xf]
    %v41 = vld [vmem:[#allocation5 + $0x4] sm:$0xf]
    %v42 = vld [vmem:[#allocation5 + $0x8] sm:$0xf]
    %v43 = vld [vmem:[#allocation5 + $0xc] sm:$0xf]
    %v48 = vunpack.c.l.b16 %v40
    %v49 = vunpack.c.l.b16 %v41
    %v50 = vunpack.c.l.b16 %v42
    %v51 = vunpack.c.l.b16 %v43
    %v52 = vpack.c.b16 %v49, %v48
    %v53 = vpack.c.b16 %v51, %v50
    %vm56 = vcmask 261120
    %v58 = vsel %vm56, %v39, 0
    %60 = vmatprep.subr.bf16.mxu0 0
    %61 = vmatpush1.bf16.msra.mxu0 %v52
    %62 = vmatprep.subr.bf16.mxu0 0
    %63 = vmatpush1.bf16.msra.mxu0 %v53
    %64 = vmatprep.subr.bf16.mxu0 0
    %65 = vmatpush1.bf16.msra.mxu0 0
    %66 = vmatprep.subr.bf16.mxu0 0
    %67 = vmatpush1.bf16.msra.mxu0 0
    %68 = vmatprep.subr.bf16.mxu0 0
    %69 = vmatpush1.bf16.msra.mxu0 0
    %70 = vmatprep.subr.bf16.mxu0 0
    %71 = vmatpush1.bf16.msra.mxu0 0
    %72 = vmatprep.subr.bf16.mxu0 0
    %73 = vmatpush1.bf16.msra.mxu0 0
    %74 = vmatprep.subr.bf16.mxu0 0
    %75 = vmatpush1.bf16.msra.mxu0 0
    %76 = vmatprep.subr.bf16.mxu0 0
    %77 = vmatpush1.bf16.msra.mxu0 0
    %78 = vmatprep.subr.bf16.mxu0 0
    %79 = vmatpush1.bf16.msra.mxu0 0
    %80 = vmatprep.subr.bf16.mxu0 0
    %81 = vmatpush1.bf16.msra.mxu0 0
    %82 = vmatprep.subr.bf16.mxu0 0
    %83 = vmatpush1.bf16.msra.mxu0 0
    %84 = vmatprep.subr.bf16.mxu0 0
    %85 = vmatpush1.bf16.msra.mxu0 0
    %86 = vmatprep.subr.bf16.mxu0 0
    %87 = vmatpush1.bf16.msra.mxu0 0
    %88 = vmatprep.subr.bf16.mxu0 0
    %89 = vmatpush1.bf16.msra.mxu0 0
    %90 = vmatprep.subr.bf16.mxu0 0
    %91 = vmatpush1.bf16.msra.mxu0 0
    %92 = vmatprep.mubr.bf16.mxu0 0
    %93 = vmatmul.mubr.bf16.gmra.mrb[0].mxu0 %v58
    %v94 = vpop.f32.mrb[0].mxu0
    %v95 = vadd.f32 0.0, %v94
    %v96 = vpop.f32.mrb[0].mxu0
    %v97 = vpop.f32.mrb[0].mxu0
    %v98 = vpop.f32.mrb[0].mxu0
    %99 = vdwg.mxu0
    %100 = vst [vmem:[#allocation7] sm:$0xff] %v95
    // Predicated region
    $region18: #{tpu_custom_call.1} parent=1 // pred_check
      _
    $region19: #{tpu_custom_call.1} parent=1 // pred_check_branch
      %102 = sbr.rel (0) target = $region21
    $region20: #{tpu_custom_call.1} parent=1 // pred_region
      %s104 = ssub.s32 128, 128
      %105 = vsyncadd [#allocation4], %s104
      %s107 = sshll.u32 [#allocation7], 4
      %s108 = int_to_ptr.vmem [resolvable:$true] %s107
      %110 = dma.vmem_to_hbm [thread:$0]  %s108, 128, %s2, [#allocation4]
    $region21: #{tpu_custom_call.1} parent=1 // pred_fallthru
      _
    // Predicated region
    $region22: #{tpu_custom_call.1} parent=1 // pred_check
      _
    $region23: #{tpu_custom_call.1} parent=1 // pred_check_branch
      %112 = sbr.rel (0) target = $region25
    $region24: #{tpu_custom_call.1} parent=1 // pred_region
      %113 = dma.done [#allocation4], 128
    $region25: #{tpu_custom_call.1} parent=1 // pred_fallthru
      _
    %114 = vsyncpa [#allocation3], 1
    %115 = vsyncpa [#allocation6], 1
    %116 = vsyncpa [#allocation4], 1

</llo_original>
